<compile_context>
chip_gen: v7x
topology: tpu7x:2x2x1
jax: 0.10.0
libtpu: 0.0.40
codegen_flags: <defaults>
</compile_context>

<pallas_src>
import jax
import jax.numpy as jnp
from jax.experimental import pallas as pl
from jax.experimental.pallas import tpu as pltpu


def _mlp_kernel(xt_ref,
                w1_ref, b1_ref,
                w2_ref, b2_ref,
                w3_ref, b3_ref,
                w4_ref, b4_ref,
                o_ref):
    """Fused MLP, computed fully TRANSPOSED (features x batch).

    tanh(W1^T @ in^T + b1) -> tanh(W2^T @ . + b2) -> tanh(W3^T @ . + b3)
    -> W4^T @ . + b4.  All intermediates are (mid, tile): batch on lanes, so
    VPU/EUP work is lane-dense and the final store is an unmasked vst block.
    """
    cd = w2_ref.dtype  # MXU operand dtype (f32 or bf16); accumulation is f32

    # Layer 1: single K = in_features contraction (concat fused in wrapper).
    h = jnp.tanh(jnp.dot(w1_ref[...], xt_ref[...],
                         preferred_element_type=jnp.float32)
                 + b1_ref[...]).astype(cd)
    # Layer 2
    h = jnp.tanh(jnp.dot(w2_ref[...], h,
                         preferred_element_type=jnp.float32)
                 + b2_ref[...]).astype(cd)
    # Layer 3
    h = jnp.tanh(jnp.dot(w3_ref[...], h,
                         preferred_element_type=jnp.float32)
                 + b3_ref[...]).astype(cd)
    # Layer 4 (no activation); output already (out_f, tile) lane-dense.
    o_ref[...] = (jnp.dot(w4_ref[...], h,
                          preferred_element_type=jnp.float32)
                  + b4_ref[...]).astype(o_ref.dtype)


def _round_up(a, m):
    return -(-a // m) * m


def _padded_vmem_bytes(shape, dtype):
    """VMEM footprint of one block: last dim padded to 128 lanes,
    second-to-last to 8 sublanes (16 for 16-bit dtypes)."""
    itemsize = jnp.dtype(dtype).itemsize
    sublane = 8 * max(1, 4 // itemsize)
    s = list(shape)
    s[-1] = _round_up(s[-1], 128)
    if len(s) >= 2:
        s[-2] = _round_up(s[-2], sublane)
    n = 1
    for d in s:
        n *= int(d)
    return n * itemsize


def _default_min_grid_steps():
    # v7x has 2 TensorCores per chip: keep >= 2 grid steps so the "parallel"
    # batch axis can be sharded across both. v5e/v6e: single-block path wins.
    try:
        kind = jax.devices()[0].device_kind.lower()
        if "v7" in kind:
            return 2
    except Exception:
        pass
    return 1


def mlp_forward(x, t, params, *, batch_tile=4096, compute_dtype=jnp.float32,
                min_grid_steps=None):
    """Pallas implementation of Net.forward(x, t)."""
    (w1, b1), (w2, b2), (w3, b3), (w4, b4) = params
    B = x.shape[0]
    in_f = x.shape[1] + t.shape[1]
    mid1, mid2 = w1.shape[1], w2.shape[1]
    out_f = w4.shape[1]
    assert batch_tile % 128 == 0, "batch_tile must be a multiple of 128"

    if min_grid_steps is None:
        min_grid_steps = _default_min_grid_steps()
    min_grid_steps = max(1, int(min_grid_steps))

    # Transposed, concatenated input: (in_f, B), batch on the lane axis.
    xt = jnp.concatenate([x, t], axis=1).T.astype(compute_dtype)

    # Transposed weights (fout, fin) and column biases (fout, 1) in f32.
    w1t = w1.T.astype(compute_dtype)
    w2t = w2.T.astype(compute_dtype)
    w3t = w3.T.astype(compute_dtype)
    w4t = w4.T.astype(compute_dtype)
    b1c = b1.reshape(mid1, 1).astype(jnp.float32)
    b2c = b2.reshape(mid2, 1).astype(jnp.float32)
    b3c = b3.reshape(mid2, 1).astype(jnp.float32)
    b4c = b4.reshape(out_f, 1).astype(jnp.float32)

    # ---- batch tiling ----
    if min_grid_steps > 1 and B > 128:
        # Ensure >= min_grid_steps grid steps (v7x megacore), 128-aligned tiles.
        tile = min(batch_tile, _round_up(pl.cdiv(B, min_grid_steps), 128))
    elif B <= batch_tile:
        tile = B                      # single full block, no padding
    else:
        tile = batch_tile

    if tile == B:
        Bp = B
    else:
        assert tile % 128 == 0
        Bp = _round_up(B, tile)
        if Bp != B:
            xt = jnp.pad(xt, ((0, 0), (0, Bp - B)))
    grid = (Bp // tile,)

    def whole(arr):
        # Whole-array block, replicated across the batch grid.
        # (pl.Buffered(1) single-buffering would only matter for large
        # mid_features; weights here are a few KiB, so keep the default.)
        return pl.BlockSpec(arr.shape, lambda i: (0, 0))

    in_specs = [
        pl.BlockSpec((in_f, tile), lambda i: (0, i)),   # transposed input tile
        whole(w1t), whole(b1c),
        whole(w2t), whole(b2c),
        whole(w3t), whole(b3c),
        whole(w4t), whole(b4c),
    ]
    out_spec = pl.BlockSpec((out_f, tile), lambda i: (0, i))

    # VMEM budget with (8,128)-padded block shapes, double-buffering assumed
    # on every pipelined buffer, plus activation-temporary headroom.
    weight_blocks = [w1t, b1c, w2t, b2c, w3t, b3c, w4t, b4c]
    est = (2 * _padded_vmem_bytes((in_f, tile), compute_dtype)
           + 2 * _padded_vmem_bytes((out_f, tile), jnp.float32)
           + 2 * sum(_padded_vmem_bytes(a.shape, a.dtype) for a in weight_blocks)
           + 6 * _padded_vmem_bytes((max(mid1, mid2), tile), jnp.float32))
    vmem_limit = int(min(max(2 * est, 16 * 1024 * 1024), 64 * 1024 * 1024))

    out_t = pl.pallas_call(
        _mlp_kernel,
        out_shape=jax.ShapeDtypeStruct((out_f, Bp), jnp.float32),
        grid_spec=pltpu.PrefetchScalarGridSpec(
            num_scalar_prefetch=0,
            grid=grid,
            in_specs=in_specs,
            out_specs=out_spec,
        ),
        compiler_params=pltpu.CompilerParams(
            dimension_semantics=("parallel",),
            vmem_limit_bytes=vmem_limit),
    )(xt, w1t, b1c, w2t, b2c, w3t, b3c, w4t, b4c)

    return out_t.T[:B]  # back to (B, out_f)


def init_params(key, in_features, mid_features, out_features):
    """Deterministic PyTorch-Linear-style init; weights stored as [in, out]."""
    dims = [
        (in_features, mid_features * 1),
        (mid_features * 1, mid_features * 2),
        (mid_features * 2, mid_features * 2),
        (mid_features * 2, out_features),
    ]
    params = []
    for (fin, fout) in dims:
        key, kw, kb = jax.random.split(key, 3)
        bound = 1.0 / jnp.sqrt(fin)
        w = jax.random.uniform(kw, (fin, fout), jnp.float32, -bound, bound)
        b = jax.random.uniform(kb, (1, fout), jnp.float32, -bound, bound)
        params.append((w, b))
    return params


def mlp_reference(x, t, params):
    (w1, b1), (w2, b2), (w3, b3), (w4, b4) = params
    h = jnp.concatenate([x, t], axis=1)
    h = jnp.tanh(h @ w1 + b1)
    h = jnp.tanh(h @ w2 + b2)
    h = jnp.tanh(h @ w3 + b3)
    return h @ w4 + b4


if __name__ == "__main__":
    key = jax.random.PRNGKey(0)
    x_dim, t_dim = 2, 1                    # in_features = x_dim + t_dim = 3
    mid_features, out_features = 32, 1

    kx, kt, kp, kx2, kt2 = jax.random.split(key, 5)
    params = init_params(kp, x_dim + t_dim, mid_features, out_features)

    # Case 1: tiny batch -> single full block, grid=(1,), f32 operands.
    B = 16
    x = jax.random.normal(kx, (B, x_dim), jnp.float32)
    t = jax.random.normal(kt, (B, t_dim), jnp.float32)
    out = jax.block_until_ready(mlp_forward(x, t, params, min_grid_steps=1))
    ref = mlp_reference(x, t, params)
    assert out.shape == (B, out_features)
    assert jnp.allclose(out, ref, atol=1e-4, rtol=1e-4)

    # Case 2: ragged batch -> multi-tile grid with batch padding and >= 2
    # grid steps (exercises the v7x two-TensorCore path on any chip).
    B2 = 300
    x2 = jax.random.normal(kx2, (B2, x_dim), jnp.float32)
    t2 = jax.random.normal(kt2, (B2, t_dim), jnp.float32)
    out2 = jax.block_until_ready(
        mlp_forward(x2, t2, params, batch_tile=128, min_grid_steps=2))
    ref2 = mlp_reference(x2, t2, params)
    assert out2.shape == (B2, out_features)
    assert jnp.allclose(out2, ref2, atol=1e-4, rtol=1e-4)

    # Case 3: bf16 MXU operands with f32 accumulation (looser tolerance).
    out_bf = jax.block_until_ready(
        mlp_forward(x, t, params, compute_dtype=jnp.bfloat16, min_grid_steps=1))
    assert out_bf.shape == (B, out_features)
    assert jnp.allclose(out_bf, ref, atol=1e-1, rtol=1e-1)

    print("KERNEL_OK")
</pallas_src>

<mosaic_0001>
module attributes {stable_mosaic.version = 11 : i64} {
  func.func @_mlp_kernel(%arg0: i32, %arg1: memref<3x16xf32, #tpu.memory_space<vmem>>, %arg2: memref<32x3xf32, #tpu.memory_space<vmem>>, %arg3: memref<32x1xf32, #tpu.memory_space<vmem>>, %arg4: memref<64x32xf32, #tpu.memory_space<vmem>>, %arg5: memref<64x1xf32, #tpu.memory_space<vmem>>, %arg6: memref<64x64xf32, #tpu.memory_space<vmem>>, %arg7: memref<64x1xf32, #tpu.memory_space<vmem>>, %arg8: memref<1x64xf32, #tpu.memory_space<vmem>>, %arg9: memref<1x1xf32, #tpu.memory_space<vmem>>, %arg10: memref<1x16xf32, #tpu.memory_space<vmem>>) attributes {dimension_semantics = [#tpu.dimension_semantics<parallel>], iteration_bounds = array<i64: 1>, scalar_prefetch = 0 : i64, scratch_operands = 0 : i64, tpu.core_type = #tpu.core_type<tc>, window_params = [{transform_indices = @transform_0, window_bounds = array<i64: 3, 16>}, {pipeline_mode = #tpu.pipeline_mode<synchronous>, transform_indices = @transform_1, window_bounds = array<i64: 32, 3>}, {pipeline_mode = #tpu.pipeline_mode<synchronous>, transform_indices = @transform_2, window_bounds = array<i64: 32, 1>}, {pipeline_mode = #tpu.pipeline_mode<synchronous>, transform_indices = @transform_3, window_bounds = array<i64: 64, 32>}, {pipeline_mode = #tpu.pipeline_mode<synchronous>, transform_indices = @transform_4, window_bounds = array<i64: 64, 1>}, {pipeline_mode = #tpu.pipeline_mode<synchronous>, transform_indices = @transform_5, window_bounds = array<i64: 64, 64>}, {pipeline_mode = #tpu.pipeline_mode<synchronous>, transform_indices = @transform_6, window_bounds = array<i64: 64, 1>}, {pipeline_mode = #tpu.pipeline_mode<synchronous>, transform_indices = @transform_7, window_bounds = array<i64: 1, 64>}, {pipeline_mode = #tpu.pipeline_mode<synchronous>, transform_indices = @transform_8, window_bounds = array<i64: 1, 1>}, {transform_indices = @transform_9, window_bounds = array<i64: 1, 16>}]} {
    %c0 = arith.constant 0 : index
    %c0_0 = arith.constant 0 : index
    %0 = vector.load %arg2[%c0, %c0_0] : memref<32x3xf32, #tpu.memory_space<vmem>>, vector<32x3xf32>
    %c0_1 = arith.constant 0 : index
    %c0_2 = arith.constant 0 : index
    %1 = vector.load %arg1[%c0_1, %c0_2] : memref<3x16xf32, #tpu.memory_space<vmem>>, vector<3x16xf32>
    %cst = arith.constant dense<0.000000e+00> : vector<32x16xf32>
    %2 = tpu.matmul %0, %1, %cst {dimension_numbers = #tpu.dot_dimension_numbers<[1], [0], [0], [1], [0, 0, 1, 1], [], []>} : vector<32x3xf32>, vector<3x16xf32>, vector<32x16xf32> -> vector<32x16xf32>
    %c0_3 = arith.constant 0 : index
    %c0_4 = arith.constant 0 : index
    %3 = vector.load %arg3[%c0_3, %c0_4] : memref<32x1xf32, #tpu.memory_space<vmem>>, vector<32x1xf32>
    %4 = vector.broadcast %3 : vector<32x1xf32> to vector<32x16xf32>
    %5 = arith.addf %2, %4 : vector<32x16xf32>
    %6 = math.tanh %5 : vector<32x16xf32>
    %c0_5 = arith.constant 0 : index
    %c0_6 = arith.constant 0 : index
    %7 = vector.load %arg4[%c0_5, %c0_6] : memref<64x32xf32, #tpu.memory_space<vmem>>, vector<64x32xf32>
    %cst_7 = arith.constant dense<0.000000e+00> : vector<64x16xf32>
    %8 = tpu.matmul %7, %6, %cst_7 {dimension_numbers = #tpu.dot_dimension_numbers<[1], [0], [0], [1], [0, 0, 1, 1], [], []>} : vector<64x32xf32>, vector<32x16xf32>, vector<64x16xf32> -> vector<64x16xf32>
    %c0_8 = arith.constant 0 : index
    %c0_9 = arith.constant 0 : index
    %9 = vector.load %arg5[%c0_8, %c0_9] : memref<64x1xf32, #tpu.memory_space<vmem>>, vector<64x1xf32>
    %10 = vector.broadcast %9 : vector<64x1xf32> to vector<64x16xf32>
    %11 = arith.addf %8, %10 : vector<64x16xf32>
    %12 = math.tanh %11 : vector<64x16xf32>
    %c0_10 = arith.constant 0 : index
    %c0_11 = arith.constant 0 : index
    %13 = vector.load %arg6[%c0_10, %c0_11] : memref<64x64xf32, #tpu.memory_space<vmem>>, vector<64x64xf32>
    %cst_12 = arith.constant dense<0.000000e+00> : vector<64x16xf32>
    %14 = tpu.matmul %13, %12, %cst_12 {dimension_numbers = #tpu.dot_dimension_numbers<[1], [0], [0], [1], [0, 0, 1, 1], [], []>} : vector<64x64xf32>, vector<64x16xf32>, vector<64x16xf32> -> vector<64x16xf32>
    %c0_13 = arith.constant 0 : index
    %c0_14 = arith.constant 0 : index
    %15 = vector.load %arg7[%c0_13, %c0_14] : memref<64x1xf32, #tpu.memory_space<vmem>>, vector<64x1xf32>
    %16 = vector.broadcast %15 : vector<64x1xf32> to vector<64x16xf32>
    %17 = arith.addf %14, %16 : vector<64x16xf32>
    %18 = math.tanh %17 : vector<64x16xf32>
    %c0_15 = arith.constant 0 : index
    %c0_16 = arith.constant 0 : index
    %19 = vector.load %arg8[%c0_15, %c0_16] : memref<1x64xf32, #tpu.memory_space<vmem>>, vector<1x64xf32>
    %cst_17 = arith.constant dense<0.000000e+00> : vector<1x16xf32>
    %20 = tpu.matmul %19, %18, %cst_17 {dimension_numbers = #tpu.dot_dimension_numbers<[1], [0], [0], [1], [0, 0, 1, 1], [], []>} : vector<1x64xf32>, vector<64x16xf32>, vector<1x16xf32> -> vector<1x16xf32>
    %c0_18 = arith.constant 0 : index
    %c0_19 = arith.constant 0 : index
    %21 = vector.load %arg9[%c0_18, %c0_19] : memref<1x1xf32, #tpu.memory_space<vmem>>, vector<1x1xf32>
    %22 = vector.broadcast %21 : vector<1x1xf32> to vector<1x16xf32>
    %23 = arith.addf %20, %22 : vector<1x16xf32>
    %c0_20 = arith.constant 0 : index
    %c0_21 = arith.constant 0 : index
    %24 = vector.load %arg10[%c0_20, %c0_21] : memref<1x16xf32, #tpu.memory_space<vmem>>, vector<1x16xf32>
    tpu.vector_store %arg10[%c0_20, %c0_21], %23 {strides = array<i32>} : memref<1x16xf32, #tpu.memory_space<vmem>>, vector<1x16xf32>,
    return
  }
  func.func @transform_0(%arg0: i32) -> (i32, i32) {
    %c0_i32 = arith.constant 0 : i32
    %c0_i32_0 = arith.constant 0 : i32
    return %c0_i32, %arg0 : i32, i32
  }
  func.func @transform_1(%arg0: i32) -> (i32, i32) {
    %c0_i32 = arith.constant 0 : i32
    %c0_i32_0 = arith.constant 0 : i32
    %c0_i32_1 = arith.constant 0 : i32
    return %c0_i32, %c0_i32_0 : i32, i32
  }
  func.func @transform_2(%arg0: i32) -> (i32, i32) {
    %c0_i32 = arith.constant 0 : i32
    %c0_i32_0 = arith.constant 0 : i32
    %c0_i32_1 = arith.constant 0 : i32
    return %c0_i32, %c0_i32_0 : i32, i32
  }
  func.func @transform_3(%arg0: i32) -> (i32, i32) {
    %c0_i32 = arith.constant 0 : i32
    %c0_i32_0 = arith.constant 0 : i32
    %c0_i32_1 = arith.constant 0 : i32
    return %c0_i32, %c0_i32_0 : i32, i32
  }
  func.func @transform_4(%arg0: i32) -> (i32, i32) {
    %c0_i32 = arith.constant 0 : i32
    %c0_i32_0 = arith.constant 0 : i32
    %c0_i32_1 = arith.constant 0 : i32
    return %c0_i32, %c0_i32_0 : i32, i32
  }
  func.func @transform_5(%arg0: i32) -> (i32, i32) {
    %c0_i32 = arith.constant 0 : i32
    %c0_i32_0 = arith.constant 0 : i32
    %c0_i32_1 = arith.constant 0 : i32
    return %c0_i32, %c0_i32_0 : i32, i32
  }
  func.func @transform_6(%arg0: i32) -> (i32, i32) {
    %c0_i32 = arith.constant 0 : i32
    %c0_i32_0 = arith.constant 0 : i32
    %c0_i32_1 = arith.constant 0 : i32
    return %c0_i32, %c0_i32_0 : i32, i32
  }
  func.func @transform_7(%arg0: i32) -> (i32, i32) {
    %c0_i32 = arith.constant 0 : i32
    %c0_i32_0 = arith.constant 0 : i32
    %c0_i32_1 = arith.constant 0 : i32
    return %c0_i32, %c0_i32_0 : i32, i32
  }
  func.func @transform_8(%arg0: i32) -> (i32, i32) {
    %c0_i32 = arith.constant 0 : i32
    %c0_i32_0 = arith.constant 0 : i32
    %c0_i32_1 = arith.constant 0 : i32
    return %c0_i32, %c0_i32_0 : i32, i32
  }
  func.func @transform_9(%arg0: i32) -> (i32, i32) {
    %c0_i32 = arith.constant 0 : i32
    %c0_i32_0 = arith.constant 0 : i32
    return %c0_i32, %arg0 : i32, i32
  }
}

</mosaic_0001>

<llo_original>
// kernel: tpu_custom_call.1
$region0: #{tpu_custom_call.1}
  #allocation0 [shape = 'u32[]', space=smem, size = 0x4, offset = 0x4, fixed_abs, tag = 'smem constant byte address 0x4 - core index']
  #allocation1 [shape = 'u32[144,128]{1,0:T(1,128)}', space=vmem, size = 0x12000, scoped, tag = 'internal scratch']
  #allocation2 [shape = 'f32[1,1]{1,0:T(1,128)S(1)}', space=vmem, size = 0x200, scoped, tag = 'scoped memory for tpu_custom_call.1']
  %s0 = inlined_call_operand.vmem [shape: f32[3,16], index: 0, kind: input, shape index: {}]
  %s1 = inlined_call_operand.vmem [shape: f32[32,3], index: 1, kind: input, shape index: {}]
  %s2 = inlined_call_operand.vmem [shape: f32[32,1], index: 2, kind: input, shape index: {}]
  %s3 = inlined_call_operand.vmem [shape: f32[64,32], index: 3, kind: input, shape index: {}]
  %s4 = inlined_call_operand.vmem [shape: f32[64,1], index: 4, kind: input, shape index: {}]
  %s5 = inlined_call_operand.vmem [shape: f32[64,64], index: 5, kind: input, shape index: {}]
  %s6 = inlined_call_operand.vmem [shape: f32[64,1], index: 6, kind: input, shape index: {}]
  %s7 = inlined_call_operand.vmem [shape: f32[1,64], index: 7, kind: input, shape index: {}]
  %s8 = inlined_call_operand.<no memory space> [shape: f32[1,1], index: 8, kind: input, shape index: {}]
  %s9 = inlined_call_operand.hbm [shape: f32[1,16], index: 9, kind: output, shape index: {}]
  %s10 = sld [smem:[#allocation0]]
  $region46: #{tpu_custom_call.1} parent=0
    _
  %s12 = ssub.s32 1, %s10
  %s13 = scalar_select 0, %s12, %s10
  %v14 = vstv %s8
  %15 = vst [vmem:[#allocation2] sm:$0x1] %v14
  $region1: #{tpu_custom_call.1} parent=0
    #allocation3 [shape = 'u8[512]{0}', space=vmem, size = 0x400, scoped, tag = 'output window, operand 0, single buffered']
    #allocation4 [shape = 's32[1]{0}', space=sflag, size = 0x4, scoped, tag = 'scoped memory for tpu_custom_call.1']
    %16 = vsyncpa [#allocation4], 0
    // Predicated region
    $region2: #{tpu_custom_call.1} parent=1 // pred_check
      _
    $region3: #{tpu_custom_call.1} parent=1 // pred_check_branch
      %18 = sbr.rel (0) target = $region5
    $region4: #{tpu_custom_call.1} parent=1 // pred_region
      _
    $region5: #{tpu_custom_call.1} parent=1 // pred_fallthru
      _
    // Predicated region
    $region6: #{tpu_custom_call.1} parent=1 // pred_check
      _
    $region7: #{tpu_custom_call.1} parent=1 // pred_check_branch
      %20 = sbr.rel (0) target = $region9
    $region8: #{tpu_custom_call.1} parent=1 // pred_region
      _
    $region9: #{tpu_custom_call.1} parent=1 // pred_fallthru
      _
    // Predicated region
    $region10: #{tpu_custom_call.1} parent=1 // pred_check
      _
    $region11: #{tpu_custom_call.1} parent=1 // pred_check_branch
      %22 = sbr.rel (0) target = $region13
    $region12: #{tpu_custom_call.1} parent=1 // pred_region
      _
    $region13: #{tpu_custom_call.1} parent=1 // pred_fallthru
      _
    // Predicated region
    $region14: #{tpu_custom_call.1} parent=1 // pred_check
      _
    $region15: #{tpu_custom_call.1} parent=1 // pred_check_branch
      %24 = sbr.rel (0) target = $region17
    $region16: #{tpu_custom_call.1} parent=1 // pred_region
      _
    $region17: #{tpu_custom_call.1} parent=1 // pred_fallthru
      _
    // Predicated region
    $region18: #{tpu_custom_call.1} parent=1 // pred_check
      _
    $region19: #{tpu_custom_call.1} parent=1 // pred_check_branch
      %26 = sbr.rel (0) target = $region21
    $region20: #{tpu_custom_call.1} parent=1 // pred_region
      _
    $region21: #{tpu_custom_call.1} parent=1 // pred_fallthru
      _
    // Predicated region
    $region22: #{tpu_custom_call.1} parent=1 // pred_check
      _
    $region23: #{tpu_custom_call.1} parent=1 // pred_check_branch
      %28 = sbr.rel (0) target = $region25
    $region24: #{tpu_custom_call.1} parent=1 // pred_region
      _
    $region25: #{tpu_custom_call.1} parent=1 // pred_fallthru
      _
    // Predicated region
    $region26: #{tpu_custom_call.1} parent=1 // pred_check
      _
    $region27: #{tpu_custom_call.1} parent=1 // pred_check_branch
      %30 = sbr.rel (0) target = $region29
    $region28: #{tpu_custom_call.1} parent=1 // pred_region
      _
    $region29: #{tpu_custom_call.1} parent=1 // pred_fallthru
      _
    // Predicated region
    $region30: #{tpu_custom_call.1} parent=1 // pred_check
      _
    $region31: #{tpu_custom_call.1} parent=1 // pred_check_branch
      %32 = sbr.rel (0) target = $region33
    $region32: #{tpu_custom_call.1} parent=1 // pred_region
      _
    $region33: #{tpu_custom_call.1} parent=1 // pred_fallthru
      _
    // Predicated region
    $region34: #{tpu_custom_call.1} parent=1 // pred_check
      _
    $region35: #{tpu_custom_call.1} parent=1 // pred_check_branch
      %34 = sbr.rel (0) target = $region37
    $region36: #{tpu_custom_call.1} parent=1 // pred_region
      _
    $region37: #{tpu_custom_call.1} parent=1 // pred_fallthru
      _
    %v35 = vld [vmem:[%s1] sm:$0xff]
    %v36 = vld [vmem:[%s1 + $0x8] sm:$0xff]
    %v37 = vld [vmem:[%s1 + $0x10] sm:$0xff]
    %v38 = vld [vmem:[%s1 + $0x18] sm:$0xff]
    %v39 = vld [vmem:[%s0] sm:$0x7]
    %v40 = vld [vmem:[%s2] sm:$0xff]
    %v41 = vld [vmem:[%s2 + $0x8] sm:$0xff]
    %v42 = vld [vmem:[%s2 + $0x10] sm:$0xff]
    %v43 = vld [vmem:[%s2 + $0x18] sm:$0xff]
    %45 = vset.pattern.permute.xlu0 0
    %46 = vperm.xlu0 %45, %v40
    %v47 = vpop.permute.xlu0 %46
    %50 = vset.pattern.permute.xlu0 0
    %51 = vperm.xlu0 %50, %v41
    %v52 = vpop.permute.xlu0 %51
    %55 = vset.pattern.permute.xlu0 0
    %56 = vperm.xlu0 %55, %v42
    %v57 = vpop.permute.xlu0 %56
    %60 = vset.pattern.permute.xlu0 0
    %61 = vperm.xlu0 %60, %v43
    %v62 = vpop.permute.xlu0 %61
    %vm64 = vcmask 23552
    %v66 = vsel %vm64, %v35, 0
    %v69 = vsel %vm64, %v36, 0
    %v72 = vsel %vm64, %v37, 0
    %v75 = vsel %vm64, %v38, 0
    %vm77 = vcmask 1042432
    %v79 = vsel %vm77, %v39, 0
    %81 = vmatprep.subr.mxu0 0.0
    %82 = vmatpush1.msra.mxu0 %v79
    %83 = vmatprep.subr.mxu0 0.0
    %84 = vmatpush1.msra.mxu0 0.0
    %85 = vmatprep.subr.mxu0 0.0
    %86 = vmatpush1.msra.mxu0 0.0
    %87 = vmatprep.subr.mxu0 0.0
    %88 = vmatpush1.msra.mxu0 0.0
    %89 = vmatprep.subr.mxu0 0.0
    %90 = vmatpush1.msra.mxu0 0.0
    %91 = vmatprep.subr.mxu0 0.0
    %92 = vmatpush1.msra.mxu0 0.0
    %93 = vmatprep.subr.mxu0 0.0
    %94 = vmatpush1.msra.mxu0 0.0
    %95 = vmatprep.subr.mxu0 0.0
    %96 = vmatpush1.msra.mxu0 0.0
    %97 = vmatprep.subr.mxu0 0.0
    %98 = vmatpush1.msra.mxu0 0.0
    %99 = vmatprep.subr.mxu0 0.0
    %100 = vmatpush1.msra.mxu0 0.0
    %101 = vmatprep.subr.mxu0 0.0
    %102 = vmatpush1.msra.mxu0 0.0
    %103 = vmatprep.subr.mxu0 0.0
    %104 = vmatpush1.msra.mxu0 0.0
    %105 = vmatprep.subr.mxu0 0.0
    %106 = vmatpush1.msra.mxu0 0.0
    %107 = vmatprep.subr.mxu0 0.0
    %108 = vmatpush1.msra.mxu0 0.0
    %109 = vmatprep.subr.mxu0 0.0
    %110 = vmatpush1.msra.mxu0 0.0
    %111 = vmatprep.subr.mxu0 0.0
    %112 = vmatpush1.msra.mxu0 0.0
    %113 = vmatprep.subr.mxu0 0.0
    %114 = vmatpush1.msra.mxu0 0.0
    %115 = vmatprep.subr.mxu0 0.0
    %116 = vmatpush1.msra.mxu0 0.0
    %117 = vmatprep.subr.mxu0 0.0
    %118 = vmatpush1.msra.mxu0 0.0
    %119 = vmatprep.subr.mxu0 0.0
    %120 = vmatpush1.msra.mxu0 0.0
    %121 = vmatprep.subr.mxu0 0.0
    %122 = vmatpush1.msra.mxu0 0.0
    %123 = vmatprep.subr.mxu0 0.0
    %124 = vmatpush1.msra.mxu0 0.0
    %125 = vmatprep.subr.mxu0 0.0
    %126 = vmatpush1.msra.mxu0 0.0
    %127 = vmatprep.subr.mxu0 0.0
    %128 = vmatpush1.msra.mxu0 0.0
    %129 = vmatprep.subr.mxu0 0.0
    %130 = vmatpush1.msra.mxu0 0.0
    %131 = vmatprep.subr.mxu0 0.0
    %132 = vmatpush1.msra.mxu0 0.0
    %133 = vmatprep.subr.mxu0 0.0
    %134 = vmatpush1.msra.mxu0 0.0
    %135 = vmatprep.subr.mxu0 0.0
    %136 = vmatpush1.msra.mxu0 0.0
    %137 = vmatprep.subr.mxu0 0.0
    %138 = vmatpush1.msra.mxu0 0.0
    %139 = vmatprep.subr.mxu0 0.0
    %140 = vmatpush1.msra.mxu0 0.0
    %141 = vmatprep.subr.mxu0 0.0
    %142 = vmatpush1.msra.mxu0 0.0
    %143 = vmatprep.subr.mxu0 0.0
    %144 = vmatpush1.msra.mxu0 0.0
    %145 = vmatprep.mubr.f32.mxu0 0.0
    %146 = vmatmul.mubr.f32.gmra.mrb[0].mxu0 %v66
    %v147 = vpop.f32.mrb[0].mxu0
    %v148 = vadd.f32 %v47, %v147
    %v149 = vpop.f32.mrb[0].mxu0
    %150 = vmatprep.mubr.f32.mxu0 0.0
    %151 = vmatmul.mubr.f32.gmra.mrb[0].mxu0 %v69
    %v152 = vpop.f32.mrb[0].mxu0
    %v153 = vadd.f32 %v52, %v152
    %v154 = vpop.f32.mrb[0].mxu0
    %155 = vmatprep.mubr.f32.mxu0 0.0
    %156 = vmatmul.mubr.f32.gmra.mrb[0].mxu0 %v72
    %v157 = vpop.f32.mrb[0].mxu0
    %v158 = vadd.f32 %v57, %v157
    %v159 = vpop.f32.mrb[0].mxu0
    %160 = vmatprep.mubr.f32.mxu0 0.0
    %161 = vmatmul.mubr.f32.gmra.mrb[0].mxu0 %v75
    %v162 = vpop.f32.mrb[0].mxu0
    %v163 = vadd.f32 %v62, %v162
    %v164 = vpop.f32.mrb[0].mxu0
    %165 = vdwg.mxu0
    %v166 = vtanh.pop %v148
    %v167 = vtanh.pop %v153
    %v168 = vtanh.pop %v158
    %v169 = vtanh.pop %v163
    %v170 = vld [vmem:[%s3] sm:$0xff]
    %v171 = vld [vmem:[%s3 + $0x8] sm:$0xff]
    %v172 = vld [vmem:[%s3 + $0x10] sm:$0xff]
    %v173 = vld [vmem:[%s3 + $0x18] sm:$0xff]
    %v174 = vld [vmem:[%s3 + $0x20] sm:$0xff]
    %v175 = vld [vmem:[%s3 + $0x28] sm:$0xff]
    %v176 = vld [vmem:[%s3 + $0x30] sm:$0xff]
    %v177 = vld [vmem:[%s3 + $0x38] sm:$0xff]
    %v178 = vld [vmem:[%s4] sm:$0xff]
    %v179 = vld [vmem:[%s4 + $0x8] sm:$0xff]
    %v180 = vld [vmem:[%s4 + $0x10] sm:$0xff]
    %v181 = vld [vmem:[%s4 + $0x18] sm:$0xff]
    %v182 = vld [vmem:[%s4 + $0x20] sm:$0xff]
    %v183 = vld [vmem:[%s4 + $0x28] sm:$0xff]
    %v184 = vld [vmem:[%s4 + $0x30] sm:$0xff]
    %v185 = vld [vmem:[%s4 + $0x38] sm:$0xff]
    %187 = vset.pattern.permute.xlu0 0
    %188 = vperm.xlu0 %187, %v178
    %v189 = vpop.permute.xlu0 %188
    %192 = vset.pattern.permute.xlu0 0
    %193 = vperm.xlu0 %192, %v179
    %v194 = vpop.permute.xlu0 %193
    %197 = vset.pattern.permute.xlu0 0
    %198 = vperm.xlu0 %197, %v180
    %v199 = vpop.permute.xlu0 %198
    %202 = vset.pattern.permute.xlu0 0
    %203 = vperm.xlu0 %202, %v181
    %v204 = vpop.permute.xlu0 %203
    %207 = vset.pattern.permute.xlu0 0
    %208 = vperm.xlu0 %207, %v182
    %v209 = vpop.permute.xlu0 %208
    %212 = vset.pattern.permute.xlu0 0
    %213 = vperm.xlu0 %212, %v183
    %v214 = vpop.permute.xlu0 %213
    %217 = vset.pattern.permute.xlu0 0
    %218 = vperm.xlu0 %217, %v184
    %v219 = vpop.permute.xlu0 %218
    %222 = vset.pattern.permute.xlu0 0
    %223 = vperm.xlu0 %222, %v185
    %v224 = vpop.permute.xlu0 %223
    %vm226 = vcmask 261120
    %v228 = vsel %vm226, %v170, 0
    %v231 = vsel %vm226, %v171, 0
    %v234 = vsel %vm226, %v172, 0
    %v237 = vsel %vm226, %v173, 0
    %v240 = vsel %vm226, %v174, 0
    %v243 = vsel %vm226, %v175, 0
    %v246 = vsel %vm226, %v176, 0
    %v249 = vsel %vm226, %v177, 0
    %251 = vmatprep.subr.mxu0 0.0
    %252 = vmatpush1.msra.mxu0 %v166
    %253 = vmatprep.subr.mxu0 0.0
    %254 = vmatpush1.msra.mxu0 %v167
    %255 = vmatprep.subr.mxu0 0.0
    %256 = vmatpush1.msra.mxu0 %v168
    %257 = vmatprep.subr.mxu0 0.0
    %258 = vmatpush1.msra.mxu0 %v169
    %259 = vmatprep.subr.mxu0 0.0
    %260 = vmatpush1.msra.mxu0 0.0
    %261 = vmatprep.subr.mxu0 0.0
    %262 = vmatpush1.msra.mxu0 0.0
    %263 = vmatprep.subr.mxu0 0.0
    %264 = vmatpush1.msra.mxu0 0.0
    %265 = vmatprep.subr.mxu0 0.0
    %266 = vmatpush1.msra.mxu0 0.0
    %267 = vmatprep.subr.mxu0 0.0
    %268 = vmatpush1.msra.mxu0 0.0
    %269 = vmatprep.subr.mxu0 0.0
    %270 = vmatpush1.msra.mxu0 0.0
    %271 = vmatprep.subr.mxu0 0.0
    %272 = vmatpush1.msra.mxu0 0.0
    %273 = vmatprep.subr.mxu0 0.0
    %274 = vmatpush1.msra.mxu0 0.0
    %275 = vmatprep.subr.mxu0 0.0
    %276 = vmatpush1.msra.mxu0 0.0
    %277 = vmatprep.subr.mxu0 0.0
    %278 = vmatpush1.msra.mxu0 0.0
    %279 = vmatprep.subr.mxu0 0.0
    %280 = vmatpush1.msra.mxu0 0.0
    %281 = vmatprep.subr.mxu0 0.0
    %282 = vmatpush1.msra.mxu0 0.0
    %283 = vmatprep.subr.mxu0 0.0
    %284 = vmatpush1.msra.mxu0 0.0
    %285 = vmatprep.subr.mxu0 0.0
    %286 = vmatpush1.msra.mxu0 0.0
    %287 = vmatprep.subr.mxu0 0.0
    %288 = vmatpush1.msra.mxu0 0.0
    %289 = vmatprep.subr.mxu0 0.0
    %290 = vmatpush1.msra.mxu0 0.0
    %291 = vmatprep.subr.mxu0 0.0
    %292 = vmatpush1.msra.mxu0 0.0
    %293 = vmatprep.subr.mxu0 0.0
    %294 = vmatpush1.msra.mxu0 0.0
    %295 = vmatprep.subr.mxu0 0.0
    %296 = vmatpush1.msra.mxu0 0.0
    %297 = vmatprep.subr.mxu0 0.0
    %298 = vmatpush1.msra.mxu0 0.0
    %299 = vmatprep.subr.mxu0 0.0
    %300 = vmatpush1.msra.mxu0 0.0
    %301 = vmatprep.subr.mxu0 0.0
    %302 = vmatpush1.msra.mxu0 0.0
    %303 = vmatprep.subr.mxu0 0.0
    %304 = vmatpush1.msra.mxu0 0.0
    %305 = vmatprep.subr.mxu0 0.0
    %306 = vmatpush1.msra.mxu0 0.0
    %307 = vmatprep.subr.mxu0 0.0
    %308 = vmatpush1.msra.mxu0 0.0
    %309 = vmatprep.subr.mxu0 0.0
    %310 = vmatpush1.msra.mxu0 0.0
    %311 = vmatprep.subr.mxu0 0.0
    %312 = vmatpush1.msra.mxu0 0.0
    %313 = vmatprep.subr.mxu0 0.0
    %314 = vmatpush1.msra.mxu0 0.0
    %315 = vmatprep.mubr.f32.mxu0 0.0
    %316 = vmatmul.mubr.f32.gmra.mrb[0].mxu0 %v228
    %v317 = vpop.f32.mrb[0].mxu0
    %v318 = vadd.f32 %v189, %v317
    %v319 = vpop.f32.mrb[0].mxu0
    %320 = vmatprep.mubr.f32.mxu0 0.0
    %321 = vmatmul.mubr.f32.gmra.mrb[0].mxu0 %v231
    %v322 = vpop.f32.mrb[0].mxu0
    %v323 = vadd.f32 %v194, %v322
    %v324 = vpop.f32.mrb[0].mxu0
    %325 = vmatprep.mubr.f32.mxu0 0.0
    %326 = vmatmul.mubr.f32.gmra.mrb[0].mxu0 %v234
    %v327 = vpop.f32.mrb[0].mxu0
    %v328 = vadd.f32 %v199, %v327
    %v329 = vpop.f32.mrb[0].mxu0
    %330 = vmatprep.mubr.f32.mxu0 0.0
    %331 = vmatmul.mubr.f32.gmra.mrb[0].mxu0 %v237
    %v332 = vpop.f32.mrb[0].mxu0
    %v333 = vadd.f32 %v204, %v332
    %v334 = vpop.f32.mrb[0].mxu0
    %335 = vmatprep.mubr.f32.mxu0 0.0
    %336 = vmatmul.mubr.f32.gmra.mrb[0].mxu0 %v240
    %v337 = vpop.f32.mrb[0].mxu0
    %v338 = vadd.f32 %v209, %v337
    %v339 = vpop.f32.mrb[0].mxu0
    %340 = vmatprep.mubr.f32.mxu0 0.0
    %341 = vmatmul.mubr.f32.gmra.mrb[0].mxu0 %v243
    %v342 = vpop.f32.mrb[0].mxu0
    %v343 = vadd.f32 %v214, %v342
    %v344 = vpop.f32.mrb[0].mxu0
    %345 = vmatprep.mubr.f32.mxu0 0.0
    %346 = vmatmul.mubr.f32.gmra.mrb[0].mxu0 %v246
    %v347 = vpop.f32.mrb[0].mxu0
    %v348 = vadd.f32 %v219, %v347
    %v349 = vpop.f32.mrb[0].mxu0
    %350 = vmatprep.mubr.f32.mxu0 0.0
    %351 = vmatmul.mubr.f32.gmra.mrb[0].mxu0 %v249
    %v352 = vpop.f32.mrb[0].mxu0
    %v353 = vadd.f32 %v224, %v352
    %v354 = vpop.f32.mrb[0].mxu0
    %355 = vdwg.mxu0
    %v356 = vtanh.pop %v318
    %v357 = vtanh.pop %v323
    %v358 = vtanh.pop %v328
    %v359 = vtanh.pop %v333
    %v360 = vtanh.pop %v338
    %v361 = vtanh.pop %v343
    %v362 = vtanh.pop %v348
    %v363 = vtanh.pop %v353
    %v364 = vld [vmem:[%s5] sm:$0xff]
    %v365 = vld [vmem:[%s5 + $0x8] sm:$0xff]
    %v366 = vld [vmem:[%s5 + $0x10] sm:$0xff]
    %v367 = vld [vmem:[%s5 + $0x18] sm:$0xff]
    %v368 = vld [vmem:[%s5 + $0x20] sm:$0xff]
    %v369 = vld [vmem:[%s5 + $0x28] sm:$0xff]
    %v370 = vld [vmem:[%s5 + $0x30] sm:$0xff]
    %v371 = vld [vmem:[%s5 + $0x38] sm:$0xff]
    %v372 = vld [vmem:[%s6] sm:$0xff]
    %v373 = vld [vmem:[%s6 + $0x8] sm:$0xff]
    %v374 = vld [vmem:[%s6 + $0x10] sm:$0xff]
    %v375 = vld [vmem:[%s6 + $0x18] sm:$0xff]
    %v376 = vld [vmem:[%s6 + $0x20] sm:$0xff]
    %v377 = vld [vmem:[%s6 + $0x28] sm:$0xff]
    %v378 = vld [vmem:[%s6 + $0x30] sm:$0xff]
    %v379 = vld [vmem:[%s6 + $0x38] sm:$0xff]
    %381 = vset.pattern.permute.xlu0 0
    %382 = vperm.xlu0 %381, %v372
    %v383 = vpop.permute.xlu0 %382
    %386 = vset.pattern.permute.xlu0 0
    %387 = vperm.xlu0 %386, %v373
    %v388 = vpop.permute.xlu0 %387
    %391 = vset.pattern.permute.xlu0 0
    %392 = vperm.xlu0 %391, %v374
    %v393 = vpop.permute.xlu0 %392
    %396 = vset.pattern.permute.xlu0 0
    %397 = vperm.xlu0 %396, %v375
    %v398 = vpop.permute.xlu0 %397
    %401 = vset.pattern.permute.xlu0 0
    %402 = vperm.xlu0 %401, %v376
    %v403 = vpop.permute.xlu0 %402
    %406 = vset.pattern.permute.xlu0 0
    %407 = vperm.xlu0 %406, %v377
    %v408 = vpop.permute.xlu0 %407
    %411 = vset.pattern.permute.xlu0 0
    %412 = vperm.xlu0 %411, %v378
    %v413 = vpop.permute.xlu0 %412
    %416 = vset.pattern.permute.xlu0 0
    %417 = vperm.xlu0 %416, %v379
    %v418 = vpop.permute.xlu0 %417
    %vm420 = vcmask 523264
    %v422 = vsel %vm420, %v364, 0
    %v425 = vsel %vm420, %v365, 0
    %v428 = vsel %vm420, %v366, 0
    %v431 = vsel %vm420, %v367, 0
    %v434 = vsel %vm420, %v368, 0
    %v437 = vsel %vm420, %v369, 0
    %v440 = vsel %vm420, %v370, 0
    %v443 = vsel %vm420, %v371, 0
    %445 = vmatprep.subr.mxu0 0.0
    %446 = vmatpush1.msra.mxu0 %v356
    %447 = vmatprep.subr.mxu0 0.0
    %448 = vmatpush1.msra.mxu0 %v357
    %449 = vmatprep.subr.mxu0 0.0
    %450 = vmatpush1.msra.mxu0 %v358
    %451 = vmatprep.subr.mxu0 0.0
    %452 = vmatpush1.msra.mxu0 %v359
    %453 = vmatprep.subr.mxu0 0.0
    %454 = vmatpush1.msra.mxu0 %v360
    %455 = vmatprep.subr.mxu0 0.0
    %456 = vmatpush1.msra.mxu0 %v361
    %457 = vmatprep.subr.mxu0 0.0
    %458 = vmatpush1.msra.mxu0 %v362
    %459 = vmatprep.subr.mxu0 0.0
    %460 = vmatpush1.msra.mxu0 %v363
    %461 = vmatprep.subr.mxu0 0.0
    %462 = vmatpush1.msra.mxu0 0.0
    %463 = vmatprep.subr.mxu0 0.0
    %464 = vmatpush1.msra.mxu0 0.0
    %465 = vmatprep.subr.mxu0 0.0
    %466 = vmatpush1.msra.mxu0 0.0
    %467 = vmatprep.subr.mxu0 0.0
    %468 = vmatpush1.msra.mxu0 0.0
    %469 = vmatprep.subr.mxu0 0.0
    %470 = vmatpush1.msra.mxu0 0.0
    %471 = vmatprep.subr.mxu0 0.0
    %472 = vmatpush1.msra.mxu0 0.0
    %473 = vmatprep.subr.mxu0 0.0
    %474 = vmatpush1.msra.mxu0 0.0
    %475 = vmatprep.subr.mxu0 0.0
    %476 = vmatpush1.msra.mxu0 0.0
    %477 = vmatprep.subr.mxu0 0.0
    %478 = vmatpush1.msra.mxu0 0.0
    %479 = vmatprep.subr.mxu0 0.0
    %480 = vmatpush1.msra.mxu0 0.0
    %481 = vmatprep.subr.mxu0 0.0
    %482 = vmatpush1.msra.mxu0 0.0
    %483 = vmatprep.subr.mxu0 0.0
    %484 = vmatpush1.msra.mxu0 0.0
    %485 = vmatprep.subr.mxu0 0.0
    %486 = vmatpush1.msra.mxu0 0.0
    %487 = vmatprep.subr.mxu0 0.0
    %488 = vmatpush1.msra.mxu0 0.0
    %489 = vmatprep.subr.mxu0 0.0
    %490 = vmatpush1.msra.mxu0 0.0
    %491 = vmatprep.subr.mxu0 0.0
    %492 = vmatpush1.msra.mxu0 0.0
    %493 = vmatprep.subr.mxu0 0.0
    %494 = vmatpush1.msra.mxu0 0.0
    %495 = vmatprep.subr.mxu0 0.0
    %496 = vmatpush1.msra.mxu0 0.0
    %497 = vmatprep.subr.mxu0 0.0
    %498 = vmatpush1.msra.mxu0 0.0
    %499 = vmatprep.subr.mxu0 0.0
    %500 = vmatpush1.msra.mxu0 0.0
    %501 = vmatprep.subr.mxu0 0.0
    %502 = vmatpush1.msra.mxu0 0.0
    %503 = vmatprep.subr.mxu0 0.0
    %504 = vmatpush1.msra.mxu0 0.0
    %505 = vmatprep.subr.mxu0 0.0
    %506 = vmatpush1.msra.mxu0 0.0
    %507 = vmatprep.subr.mxu0 0.0
    %508 = vmatpush1.msra.mxu0 0.0
    %509 = vmatprep.mubr.f32.mxu0 0.0
    %510 = vmatmul.mubr.f32.gmra.mrb[0].mxu0 %v422
    %v511 = vpop.f32.mrb[0].mxu0
    %v512 = vadd.f32 %v383, %v511
    %v513 = vpop.f32.mrb[0].mxu0
    %514 = vmatprep.mubr.f32.mxu0 0.0
    %515 = vmatmul.mubr.f32.gmra.mrb[0].mxu0 %v425
    %v516 = vpop.f32.mrb[0].mxu0
    %v517 = vadd.f32 %v388, %v516
    %v518 = vpop.f32.mrb[0].mxu0
    %519 = vmatprep.mubr.f32.mxu0 0.0
    %520 = vmatmul.mubr.f32.gmra.mrb[0].mxu0 %v428
    %v521 = vpop.f32.mrb[0].mxu0
    %v522 = vadd.f32 %v393, %v521
    %v523 = vpop.f32.mrb[0].mxu0
    %524 = vmatprep.mubr.f32.mxu0 0.0
    %525 = vmatmul.mubr.f32.gmra.mrb[0].mxu0 %v431
    %v526 = vpop.f32.mrb[0].mxu0
    %v527 = vadd.f32 %v398, %v526
    %v528 = vpop.f32.mrb[0].mxu0
    %529 = vmatprep.mubr.f32.mxu0 0.0
    %530 = vmatmul.mubr.f32.gmra.mrb[0].mxu0 %v434
    %v531 = vpop.f32.mrb[0].mxu0
    %v532 = vadd.f32 %v403, %v531
    %v533 = vpop.f32.mrb[0].mxu0
    %534 = vmatprep.mubr.f32.mxu0 0.0
    %535 = vmatmul.mubr.f32.gmra.mrb[0].mxu0 %v437
    %v536 = vpop.f32.mrb[0].mxu0
    %v537 = vadd.f32 %v408, %v536
    %v538 = vpop.f32.mrb[0].mxu0
    %539 = vmatprep.mubr.f32.mxu0 0.0
    %540 = vmatmul.mubr.f32.gmra.mrb[0].mxu0 %v440
    %v541 = vpop.f32.mrb[0].mxu0
    %v542 = vadd.f32 %v413, %v541
    %v543 = vpop.f32.mrb[0].mxu0
    %544 = vmatprep.mubr.f32.mxu0 0.0
    %545 = vmatmul.mubr.f32.gmra.mrb[0].mxu0 %v443
    %v546 = vpop.f32.mrb[0].mxu0
    %v547 = vadd.f32 %v418, %v546
    %v548 = vpop.f32.mrb[0].mxu0
    %549 = vdwg.mxu0
    %v550 = vtanh.pop %v512
    %v551 = vtanh.pop %v517
    %v552 = vtanh.pop %v522
    %v553 = vtanh.pop %v527
    %v554 = vtanh.pop %v532
    %v555 = vtanh.pop %v537
    %v556 = vtanh.pop %v542
    %v557 = vtanh.pop %v547
    %v558 = vld [vmem:[%s7] sm:$0x1]
    %v559 = vld [vmem:[#allocation2] sm:$0x1]
    %561 = vset.pattern.permute.xlu0 0
    %562 = vperm.xlu0 %561, %v559
    %v563 = vpop.permute.xlu0 %562
    %v565 = vlaneseq
    %v566 = vshrl.u32 %v565, 7
    %v567 = vsub.s32 0, %v566
    %v568 = vrot.slane %v563, %v567
    %v570 = vsel %vm420, %v558, 0
    %572 = vmatprep.subr.mxu0 0.0
    %573 = vmatpush1.msra.mxu0 %v550
    %574 = vmatprep.subr.mxu0 0.0
    %575 = vmatpush1.msra.mxu0 %v551
    %576 = vmatprep.subr.mxu0 0.0
    %577 = vmatpush1.msra.mxu0 %v552
    %578 = vmatprep.subr.mxu0 0.0
    %579 = vmatpush1.msra.mxu0 %v553
    %580 = vmatprep.subr.mxu0 0.0
    %581 = vmatpush1.msra.mxu0 %v554
    %582 = vmatprep.subr.mxu0 0.0
    %583 = vmatpush1.msra.mxu0 %v555
    %584 = vmatprep.subr.mxu0 0.0
    %585 = vmatpush1.msra.mxu0 %v556
    %586 = vmatprep.subr.mxu0 0.0
    %587 = vmatpush1.msra.mxu0 %v557
    %588 = vmatprep.subr.mxu0 0.0
    %589 = vmatpush1.msra.mxu0 0.0
    %590 = vmatprep.subr.mxu0 0.0
    %591 = vmatpush1.msra.mxu0 0.0
    %592 = vmatprep.subr.mxu0 0.0
    %593 = vmatpush1.msra.mxu0 0.0
    %594 = vmatprep.subr.mxu0 0.0
    %595 = vmatpush1.msra.mxu0 0.0
    %596 = vmatprep.subr.mxu0 0.0
    %597 = vmatpush1.msra.mxu0 0.0
    %598 = vmatprep.subr.mxu0 0.0
    %599 = vmatpush1.msra.mxu0 0.0
    %600 = vmatprep.subr.mxu0 0.0
    %601 = vmatpush1.msra.mxu0 0.0
    %602 = vmatprep.subr.mxu0 0.0
    %603 = vmatpush1.msra.mxu0 0.0
    %604 = vmatprep.subr.mxu0 0.0
    %605 = vmatpush1.msra.mxu0 0.0
    %606 = vmatprep.subr.mxu0 0.0
    %607 = vmatpush1.msra.mxu0 0.0
    %608 = vmatprep.subr.mxu0 0.0
    %609 = vmatpush1.msra.mxu0 0.0
    %610 = vmatprep.subr.mxu0 0.0
    %611 = vmatpush1.msra.mxu0 0.0
    %612 = vmatprep.subr.mxu0 0.0
    %613 = vmatpush1.msra.mxu0 0.0
    %614 = vmatprep.subr.mxu0 0.0
    %615 = vmatpush1.msra.mxu0 0.0
    %616 = vmatprep.subr.mxu0 0.0
    %617 = vmatpush1.msra.mxu0 0.0
    %618 = vmatprep.subr.mxu0 0.0
    %619 = vmatpush1.msra.mxu0 0.0
    %620 = vmatprep.subr.mxu0 0.0
    %621 = vmatpush1.msra.mxu0 0.0
    %622 = vmatprep.subr.mxu0 0.0
    %623 = vmatpush1.msra.mxu0 0.0
    %624 = vmatprep.subr.mxu0 0.0
    %625 = vmatpush1.msra.mxu0 0.0
    %626 = vmatprep.subr.mxu0 0.0
    %627 = vmatpush1.msra.mxu0 0.0
    %628 = vmatprep.subr.mxu0 0.0
    %629 = vmatpush1.msra.mxu0 0.0
    %630 = vmatprep.subr.mxu0 0.0
    %631 = vmatpush1.msra.mxu0 0.0
    %632 = vmatprep.subr.mxu0 0.0
    %633 = vmatpush1.msra.mxu0 0.0
    %634 = vmatprep.subr.mxu0 0.0
    %635 = vmatpush1.msra.mxu0 0.0
    %636 = vmatprep.mubr.f32.mxu0 0.0
    %637 = vmatmul.mubr.f32.gmra.mrb[0].mxu0 %v570
    %v638 = vpop.f32.mrb[0].mxu0
    %v639 = vadd.f32 %v568, %v638
    %v640 = vpop.f32.mrb[0].mxu0
    %641 = vdwg.mxu0
    %vm642 = vcmask 122880
    %643 = vst.msk [vmem:[#allocation3] sm:$0x1] %vm642, %v639
    // Predicated region
    $region38: #{tpu_custom_call.1} parent=1 // pred_check
      _
    $region39: #{tpu_custom_call.1} parent=1 // pred_check_branch
      %645 = sbr.rel (0) target = $region41
    $region40: #{tpu_custom_call.1} parent=1 // pred_region
      %s647 = ssub.s32 16, 16
      %648 = vsyncadd [#allocation4], %s647
      %s650 = sshll.u32 [#allocation3], 4
      %s651 = int_to_ptr.vmem [resolvable:$true] %s650
      %653 = dma.vmem_to_hbm [thread:$0]  %s651, 16, %s9, [#allocation4]
    $region41: #{tpu_custom_call.1} parent=1 // pred_fallthru
      _
    // Predicated region
    $region42: #{tpu_custom_call.1} parent=1 // pred_check
      _
    $region43: #{tpu_custom_call.1} parent=1 // pred_check_branch
      %655 = sbr.rel (0) target = $region45
    $region44: #{tpu_custom_call.1} parent=1 // pred_region
      %656 = dma.done [#allocation4], 16
    $region45: #{tpu_custom_call.1} parent=1 // pred_fallthru
      _
    %657 = vsyncpa [#allocation4], 1

</llo_original>
